<compile_context>
chip_gen: v7x
topology: tpu7x:2x2x1
jax: 0.10.0
libtpu: 0.0.40
codegen_flags: <defaults>
</compile_context>

<pallas_src>
import functools

import jax
import jax.numpy as jnp
from jax.experimental import pallas as pl
from jax.experimental.pallas import tpu as pltpu

_LANES = 128


def _round_down(x, m):
    return (x // m) * m


def _triplet_loss_jnp(a2, p2, n2, margin):
    a2 = a2.astype(jnp.float32)
    p2 = p2.astype(jnp.float32)
    n2 = n2.astype(jnp.float32)
    dp = jnp.sum((a2 - p2) ** 2, axis=1)
    dn = jnp.sum((a2 - n2) ** 2, axis=1)
    return jnp.mean(jnp.maximum(dp - dn + margin, 0.0))


def _triplet_partials_kernel(a_ref, p_ref, n_ref, dp_ref, dn_ref, *,
                             rows, rt, kt_pc, sub, ragged):
    # grid = (NC, kt_pc); axis 0 = core split ("parallel"), axis 1 = reduction
    # ("arbitrary").  dp_ref/dn_ref blocks are resident across axis 1, so they
    # double as accumulators: init at k == 0, += every step, no final copy.
    k = pl.program_id(1)

    @pl.when(k == 0)
    def _():
        dp_ref[...] = jnp.zeros_like(dp_ref)
        dn_ref[...] = jnp.zeros_like(dn_ref)

    a = a_ref[...].astype(jnp.float32)      # (B, rt, 128)
    p = p_ref[...].astype(jnp.float32)
    n = n_ref[...].astype(jnp.float32)

    dpos = a - p
    dneg = a - n

    if ragged:
        # Last row-tile is partial: rows beyond `rows` hold undefined data
        # (nothing was padded in HBM), so zero their contribution.
        c = pl.program_id(0)
        start = (c * kt_pc + k) * rt
        valid = rows - start                 # > 0 by grid construction
        row_ids = jax.lax.broadcasted_iota(jnp.int32, (1, rt, _LANES), 1)
        mask = row_ids < valid
        dpos = jnp.where(mask, dpos, 0.0)
        dneg = jnp.where(mask, dneg, 0.0)

    b = a.shape[0]
    if sub == 8:
        # Free sublane-split reshape; summing over the tile-row axis is pure
        # element-wise vreg adds (no XLU); the sublane/lane reduce is deferred
        # to the wrapper.
        dp_ref[0] = dp_ref[0] + jnp.sum(
            (dpos * dpos).reshape(b, rt // 8, 8, _LANES), axis=1)
        dn_ref[0] = dn_ref[0] + jnp.sum(
            (dneg * dneg).reshape(b, rt // 8, 8, _LANES), axis=1)
    else:
        # Single small block whose row count is not a multiple of 8.
        dp_ref[0] = dp_ref[0] + jnp.sum(dpos * dpos, axis=1, keepdims=True)
        dn_ref[0] = dn_ref[0] + jnp.sum(dneg * dneg, axis=1, keepdims=True)


def triplet_loss(anchor, positive, negative, margin=1.0, *,
                 min_pallas_bytes=1 << 20, max_rows_per_block=None):
    """Triplet margin loss with squared Euclidean distances (matches module)."""
    b = anchor.shape[0]
    a2 = anchor.reshape(b, -1)
    p2 = positive.reshape(b, -1)
    n2 = negative.reshape(b, -1)
    d = a2.shape[1]
    itemsize = jnp.dtype(anchor.dtype).itemsize

    rows = d // _LANES
    rem = d - rows * _LANES

    # Tiny problems: pallas_call launch + grid-step overheads dominate; a fused
    # XLA reduction is faster.
    if rows == 0 or 3 * b * d * itemsize < min_pallas_bytes:
        return _triplet_loss_jnp(a2, p2, n2, margin)

    # ---- generation-aware sizing -------------------------------------------
    try:
        vmem_cap = int(pltpu.get_tpu_info().vmem_capacity_bytes)
    except Exception:                       # conservative (v7x-sized) fallback
        vmem_cap = 64 * 1024 * 1024
    try:
        kind = jax.devices()[0].device_kind.lower()
    except Exception:
        kind = ""

    input_budget = int(vmem_cap * 0.40)     # 3 inputs x 2 pipeline buffers
    vmem_limit = min(int(vmem_cap * 0.80), 112 * 1024 * 1024)

    sub_mult = {4: 8, 2: 16, 1: 32}.get(itemsize, 8)   # keep sublane packing dense
    bytes_per_row = 3 * 2 * b * _LANES * itemsize
    rt_budget = _round_down(input_budget // bytes_per_row, sub_mult)
    if rt_budget < sub_mult:
        # Batch too large for even one row-tile inside the VMEM budget.
        # TODO(synk): tile the batch axis instead of falling back to XLA.
        return _triplet_loss_jnp(a2, p2, n2, margin)

    rt_cap = 8192
    if max_rows_per_block is not None:
        rt_cap = max(sub_mult, _round_down(min(rt_cap, max_rows_per_block), sub_mult))

    if rows <= min(rt_budget, rt_cap):
        rt = rows                            # single block == full array dim
        kt_total = 1
    else:
        rt = min(rt_budget, rt_cap)
        kt_total = pl.cdiv(rows, rt)
    ragged = (rows % rt) != 0                # only possible when rt % 8 == 0

    # Core split: only useful on v7x (2 TensorCores / chip) and only when there
    # are enough row-tiles to split evenly.  "parallel" is sequential elsewhere.
    nc = 2 if ("v7" in kind and kt_total >= 4 and kt_total % 2 == 0) else 1
    kt_pc = kt_total // nc

    sub = 8 if rt % 8 == 0 else 1

    # Lane-dense (B, rows, 128) view.  Free bitcast when D % 128 == 0; the
    # (<128 col) remainder is a tiny pure-JAX correction below.
    if rem == 0:
        a3 = a2.reshape(b, rows, _LANES)
        p3 = p2.reshape(b, rows, _LANES)
        n3 = n2.reshape(b, rows, _LANES)
    else:
        a3 = a2[:, : rows * _LANES].reshape(b, rows, _LANES)
        p3 = p2[:, : rows * _LANES].reshape(b, rows, _LANES)
        n3 = n2[:, : rows * _LANES].reshape(b, rows, _LANES)

    feat_spec = pl.BlockSpec((b, rt, _LANES), lambda c, k: (0, c * kt_pc + k, 0))
    part_spec = pl.BlockSpec((1, b, sub, _LANES), lambda c, k: (c, 0, 0, 0))

    kernel = functools.partial(_triplet_partials_kernel, rows=rows, rt=rt,
                               kt_pc=kt_pc, sub=sub, ragged=ragged)

    dp_part, dn_part = pl.pallas_call(
        kernel,
        out_shape=(
            jax.ShapeDtypeStruct((nc, b, sub, _LANES), jnp.float32),
            jax.ShapeDtypeStruct((nc, b, sub, _LANES), jnp.float32),
        ),
        grid_spec=pltpu.PrefetchScalarGridSpec(
            num_scalar_prefetch=0,
            grid=(nc, kt_pc),
            in_specs=[feat_spec, feat_spec, feat_spec],
            out_specs=[part_spec, part_spec],
        ),
        compiler_params=pltpu.CompilerParams(
            dimension_semantics=("parallel", "arbitrary"),
            vmem_limit_bytes=vmem_limit,
        ),
    )(a3, p3, n3)

    # Tiny final combine: sum core/sublane/lane partials, add the D%128 tail,
    # apply margin + relu, batch mean.
    dp = jnp.sum(dp_part, axis=(0, 2, 3))        # (B,)
    dn = jnp.sum(dn_part, axis=(0, 2, 3))        # (B,)

    if rem:
        at = a2[:, rows * _LANES:].astype(jnp.float32)
        pt = p2[:, rows * _LANES:].astype(jnp.float32)
        nt = n2[:, rows * _LANES:].astype(jnp.float32)
        dp = dp + jnp.sum((at - pt) ** 2, axis=1)
        dn = dn + jnp.sum((at - nt) ** 2, axis=1)

    losses = jnp.maximum(dp - dn + margin, 0.0)
    return jnp.mean(losses)


def triplet_loss_ref(anchor, positive, negative, margin=1.0):
    b = anchor.shape[0]
    return _triplet_loss_jnp(anchor.reshape(b, -1), positive.reshape(b, -1),
                             negative.reshape(b, -1), margin)


if __name__ == "__main__":
    key = jax.random.PRNGKey(0)
    ks = jax.random.split(key, 12)

    def check(a, p, n, margin=1.0, tol=1e-4, **kw):
        out = triplet_loss(a, p, n, margin=margin, min_pallas_bytes=0, **kw)
        out = jax.block_until_ready(out)
        ref = triplet_loss_ref(a, p, n, margin=margin)
        assert jnp.allclose(out, ref, rtol=tol, atol=tol), (out, ref)

    # 1) D % 128 == 0, single row-tile (B=2, C=4, H=16, W=16 -> D=1024).
    a = jax.random.normal(ks[0], (2, 4, 16, 16), dtype=jnp.float32)
    p = jax.random.normal(ks[1], (2, 4, 16, 16), dtype=jnp.float32)
    n = jax.random.normal(ks[2], (2, 4, 16, 16), dtype=jnp.float32)
    check(a, p, n)

    # 2) D % 128 != 0 and rows not a multiple of 8 (tail correction, sub=1 path).
    a = jax.random.normal(ks[3], (2, 3, 37, 31), dtype=jnp.float32)
    p = jax.random.normal(ks[4], (2, 3, 37, 31), dtype=jnp.float32)
    n = jax.random.normal(ks[5], (2, 3, 37, 31), dtype=jnp.float32)
    check(a, p, n)

    # 3) Multi-step reduction with a ragged (in-kernel masked) last row-tile.
    a = jax.random.normal(ks[6], (2, 4, 8, 160), dtype=jnp.float32)
    p = jax.random.normal(ks[7], (2, 4, 8, 160), dtype=jnp.float32)
    n = jax.random.normal(ks[8], (2, 4, 8, 160), dtype=jnp.float32)
    check(a, p, n, max_rows_per_block=16)

    # 4) bf16 inputs stay bf16 into the kernel (f32 accumulation in-kernel).
    a = jax.random.normal(ks[9], (2, 4, 16, 16), dtype=jnp.bfloat16)
    p = jax.random.normal(ks[10], (2, 4, 16, 16), dtype=jnp.bfloat16)
    n = jax.random.normal(ks[11], (2, 4, 16, 16), dtype=jnp.bfloat16)
    check(a, p, n, tol=2e-3)

    # Default (tiny-input) path short-circuits to pure XLA — also verified.
    out_small = jax.block_until_ready(triplet_loss(a, p, n))
    assert jnp.allclose(out_small, triplet_loss_ref(a, p, n), rtol=2e-3, atol=2e-3)

    print("KERNEL_OK")
</pallas_src>

<mosaic_0001>
module attributes {stable_mosaic.version = 11 : i64} {
  func.func @_triplet_partials_kernel(%arg0: i32, %arg1: i32, %arg2: memref<2x8x128xf32, #tpu.memory_space<vmem>>, %arg3: memref<2x8x128xf32, #tpu.memory_space<vmem>>, %arg4: memref<2x8x128xf32, #tpu.memory_space<vmem>>, %arg5: memref<1x2x8x128xf32, #tpu.memory_space<vmem>>, %arg6: memref<1x2x8x128xf32, #tpu.memory_space<vmem>>) attributes {dimension_semantics = [#tpu.dimension_semantics<parallel>, #tpu.dimension_semantics<arbitrary>], iteration_bounds = array<i64: 1, 1>, scalar_prefetch = 0 : i64, scratch_operands = 0 : i64, tpu.core_type = #tpu.core_type<tc>, window_params = [{transform_indices = @transform_0, window_bounds = array<i64: 2, 8, 128>}, {transform_indices = @transform_1, window_bounds = array<i64: 2, 8, 128>}, {transform_indices = @transform_2, window_bounds = array<i64: 2, 8, 128>}, {transform_indices = @transform_3, window_bounds = array<i64: 1, 2, 8, 128>}, {transform_indices = @transform_4, window_bounds = array<i64: 1, 2, 8, 128>}]} {
    %c0_i32 = arith.constant 0 : i32
    %0 = arith.cmpi eq, %arg1, %c0_i32 : i32
    %1 = arith.extui %0 : i1 to i32
    %c0_i32_0 = arith.constant 0 : i32
    %2 = arith.cmpi ne, %1, %c0_i32_0 : i32
    scf.if %2 {
      %cst_26 = arith.constant 0.000000e+00 : f32
      %26 = vector.broadcast %cst_26 : f32 to vector<1x2x8x128xf32>
      %c0_27 = arith.constant 0 : index
      %c0_28 = arith.constant 0 : index
      %c0_29 = arith.constant 0 : index
      %c0_30 = arith.constant 0 : index
      %27 = vector.load %arg5[%c0_27, %c0_28, %c0_29, %c0_30] : memref<1x2x8x128xf32, #tpu.memory_space<vmem>>, vector<1x2x8x128xf32>
      tpu.vector_store %arg5[%c0_27, %c0_28, %c0_29, %c0_30], %26 {strides = array<i32>} : memref<1x2x8x128xf32, #tpu.memory_space<vmem>>, vector<1x2x8x128xf32>,
      %cst_31 = arith.constant 0.000000e+00 : f32
      %28 = vector.broadcast %cst_31 : f32 to vector<1x2x8x128xf32>
      %c0_32 = arith.constant 0 : index
      %c0_33 = arith.constant 0 : index
      %c0_34 = arith.constant 0 : index
      %c0_35 = arith.constant 0 : index
      %29 = vector.load %arg6[%c0_32, %c0_33, %c0_34, %c0_35] : memref<1x2x8x128xf32, #tpu.memory_space<vmem>>, vector<1x2x8x128xf32>
      tpu.vector_store %arg6[%c0_32, %c0_33, %c0_34, %c0_35], %28 {strides = array<i32>} : memref<1x2x8x128xf32, #tpu.memory_space<vmem>>, vector<1x2x8x128xf32>,
    } else {
    }
    %c0 = arith.constant 0 : index
    %c0_1 = arith.constant 0 : index
    %c0_2 = arith.constant 0 : index
    %3 = vector.load %arg2[%c0, %c0_1, %c0_2] : memref<2x8x128xf32, #tpu.memory_space<vmem>>, vector<2x8x128xf32>
    %c0_3 = arith.constant 0 : index
    %c0_4 = arith.constant 0 : index
    %c0_5 = arith.constant 0 : index
    %4 = vector.load %arg3[%c0_3, %c0_4, %c0_5] : memref<2x8x128xf32, #tpu.memory_space<vmem>>, vector<2x8x128xf32>
    %c0_6 = arith.constant 0 : index
    %c0_7 = arith.constant 0 : index
    %c0_8 = arith.constant 0 : index
    %5 = vector.load %arg4[%c0_6, %c0_7, %c0_8] : memref<2x8x128xf32, #tpu.memory_space<vmem>>, vector<2x8x128xf32>
    %6 = arith.subf %3, %4 : vector<2x8x128xf32>
    %7 = arith.subf %3, %5 : vector<2x8x128xf32>
    %c0_9 = arith.constant 0 : index
    %c0_10 = arith.constant 0 : index
    %c0_11 = arith.constant 0 : index
    %c0_12 = arith.constant 0 : index
    %8 = vector.load %arg5[%c0_9, %c0_10, %c0_11, %c0_12] : memref<1x2x8x128xf32, #tpu.memory_space<vmem>>, vector<1x2x8x128xf32>
    %9 = vector.shape_cast %8 : vector<1x2x8x128xf32> to vector<2x8x128xf32>
    %10 = arith.mulf %6, %6 : vector<2x8x128xf32>
    %11 = vector.shape_cast %10 : vector<2x8x128xf32> to vector<2x1x8x128xf32>
    %cst = arith.constant dense<0.000000e+00> : vector<2x8x128xf32>
    %12 = vector.multi_reduction <add>, %11, %cst [1] : vector<2x1x8x128xf32> to vector<2x8x128xf32>
    %13 = arith.addf %9, %12 : vector<2x8x128xf32>
    %c0_13 = arith.constant 0 : index
    %c0_14 = arith.constant 0 : index
    %c0_15 = arith.constant 0 : index
    %c0_16 = arith.constant 0 : index
    %14 = vector.load %arg5[%c0_13, %c0_14, %c0_15, %c0_16] : memref<1x2x8x128xf32, #tpu.memory_space<vmem>>, vector<1x2x8x128xf32>
    %15 = vector.shape_cast %14 : vector<1x2x8x128xf32> to vector<2x8x128xf32>
    %16 = vector.shape_cast %13 : vector<2x8x128xf32> to vector<1x2x8x128xf32>
    tpu.vector_store %arg5[%c0_13, %c0_14, %c0_15, %c0_16], %16 {strides = array<i32>} : memref<1x2x8x128xf32, #tpu.memory_space<vmem>>, vector<1x2x8x128xf32>,
    %c0_17 = arith.constant 0 : index
    %c0_18 = arith.constant 0 : index
    %c0_19 = arith.constant 0 : index
    %c0_20 = arith.constant 0 : index
    %17 = vector.load %arg6[%c0_17, %c0_18, %c0_19, %c0_20] : memref<1x2x8x128xf32, #tpu.memory_space<vmem>>, vector<1x2x8x128xf32>
    %18 = vector.shape_cast %17 : vector<1x2x8x128xf32> to vector<2x8x128xf32>
    %19 = arith.mulf %7, %7 : vector<2x8x128xf32>
    %20 = vector.shape_cast %19 : vector<2x8x128xf32> to vector<2x1x8x128xf32>
    %cst_21 = arith.constant dense<0.000000e+00> : vector<2x8x128xf32>
    %21 = vector.multi_reduction <add>, %20, %cst_21 [1] : vector<2x1x8x128xf32> to vector<2x8x128xf32>
    %22 = arith.addf %18, %21 : vector<2x8x128xf32>
    %c0_22 = arith.constant 0 : index
    %c0_23 = arith.constant 0 : index
    %c0_24 = arith.constant 0 : index
    %c0_25 = arith.constant 0 : index
    %23 = vector.load %arg6[%c0_22, %c0_23, %c0_24, %c0_25] : memref<1x2x8x128xf32, #tpu.memory_space<vmem>>, vector<1x2x8x128xf32>
    %24 = vector.shape_cast %23 : vector<1x2x8x128xf32> to vector<2x8x128xf32>
    %25 = vector.shape_cast %22 : vector<2x8x128xf32> to vector<1x2x8x128xf32>
    tpu.vector_store %arg6[%c0_22, %c0_23, %c0_24, %c0_25], %25 {strides = array<i32>} : memref<1x2x8x128xf32, #tpu.memory_space<vmem>>, vector<1x2x8x128xf32>,
    return
  }
  func.func @transform_0(%arg0: i32, %arg1: i32) -> (i32, i32, i32) {
    %c1_i32 = arith.constant 1 : i32
    %0 = arith.muli %arg0, %c1_i32 : i32
    %1 = arith.addi %0, %arg1 : i32
    %c0_i32 = arith.constant 0 : i32
    %c0_i32_0 = arith.constant 0 : i32
    %c0_i32_1 = arith.constant 0 : i32
    return %c0_i32, %1, %c0_i32_0 : i32, i32, i32
  }
  func.func @transform_1(%arg0: i32, %arg1: i32) -> (i32, i32, i32) {
    %c1_i32 = arith.constant 1 : i32
    %0 = arith.muli %arg0, %c1_i32 : i32
    %1 = arith.addi %0, %arg1 : i32
    %c0_i32 = arith.constant 0 : i32
    %c0_i32_0 = arith.constant 0 : i32
    %c0_i32_1 = arith.constant 0 : i32
    return %c0_i32, %1, %c0_i32_0 : i32, i32, i32
  }
  func.func @transform_2(%arg0: i32, %arg1: i32) -> (i32, i32, i32) {
    %c1_i32 = arith.constant 1 : i32
    %0 = arith.muli %arg0, %c1_i32 : i32
    %1 = arith.addi %0, %arg1 : i32
    %c0_i32 = arith.constant 0 : i32
    %c0_i32_0 = arith.constant 0 : i32
    %c0_i32_1 = arith.constant 0 : i32
    return %c0_i32, %1, %c0_i32_0 : i32, i32, i32
  }
  func.func @transform_3(%arg0: i32, %arg1: i32) -> (i32, i32, i32, i32) {
    %c0_i32 = arith.constant 0 : i32
    %c0_i32_0 = arith.constant 0 : i32
    %c0_i32_1 = arith.constant 0 : i32
    %c0_i32_2 = arith.constant 0 : i32
    return %arg0, %c0_i32, %c0_i32_0, %c0_i32_1 : i32, i32, i32, i32
  }
  func.func @transform_4(%arg0: i32, %arg1: i32) -> (i32, i32, i32, i32) {
    %c0_i32 = arith.constant 0 : i32
    %c0_i32_0 = arith.constant 0 : i32
    %c0_i32_1 = arith.constant 0 : i32
    %c0_i32_2 = arith.constant 0 : i32
    return %arg0, %c0_i32, %c0_i32_0, %c0_i32_1 : i32, i32, i32, i32
  }
}

</mosaic_0001>

<llo_original>
// kernel: tpu_custom_call.1
$region0: #{tpu_custom_call.1}
  #allocation0 [shape = 'u32[]', space=smem, size = 0x4, offset = 0x4, fixed_abs, tag = 'smem constant byte address 0x4 - core index']
  #allocation1 [shape = 'u32[144,128]{1,0:T(1,128)}', space=vmem, size = 0x12000, scoped, tag = 'internal scratch']
  %s0 = inlined_call_operand.hbm [shape: f32[2,8,128], index: 0, kind: input, shape index: {}]
  %s1 = inlined_call_operand.hbm [shape: f32[2,8,128], index: 1, kind: input, shape index: {}]
  %s2 = inlined_call_operand.hbm [shape: f32[2,8,128], index: 2, kind: input, shape index: {}]
  %s3 = inlined_call_operand.hbm [shape: f32[1,2,8,128], index: 3, kind: output, shape index: {0}]
  %s4 = inlined_call_operand.hbm [shape: f32[1,2,8,128], index: 4, kind: output, shape index: {1}]
  %5 = xla_tuple %s3, %s4
  %s6 = sld [smem:[#allocation0]]
  $region46: #{tpu_custom_call.1} parent=0
    _
  %s8 = ssub.s32 1, %s6
  %s9 = scalar_select 0, %s8, %s6
  $region1: #{tpu_custom_call.1} parent=0
    #allocation2 [shape = 'u8[8192]{0}', space=vmem, size = 0x2000, scoped, tag = 'input window, operand 0, single buffered']
    #allocation3 [shape = 's32[1]{0}', space=sflag, size = 0x4, scoped, tag = 'scoped memory for tpu_custom_call.1']
    #allocation4 [shape = 's32[1]{0}', space=sflag, size = 0x4, scoped, tag = 'scoped memory for tpu_custom_call.1']
    #allocation5 [shape = 'u8[8192]{0}', space=vmem, size = 0x2000, scoped, tag = 'input window, operand 1, single buffered']
    #allocation6 [shape = 's32[1]{0}', space=sflag, size = 0x4, scoped, tag = 'scoped memory for tpu_custom_call.1']
    #allocation7 [shape = 'u8[8192]{0}', space=vmem, size = 0x2000, scoped, tag = 'input window, operand 2, single buffered']
    #allocation8 [shape = 'u8[8192]{0}', space=vmem, size = 0x2000, scoped, tag = 'output window, operand 0, single buffered']
    #allocation9 [shape = 'u8[8192]{0}', space=vmem, size = 0x2000, scoped, tag = 'output window, operand 1, single buffered']
    #allocation10 [shape = 's32[1]{0}', space=sflag, size = 0x4, scoped, tag = 'scoped memory for tpu_custom_call.1']
    %10 = vsyncpa [#allocation3], 0
    %11 = vsyncpa [#allocation6], 0
    %12 = vsyncpa [#allocation4], 0
    %13 = vsyncpa [#allocation10], 0
    // Predicated region
    $region2: #{tpu_custom_call.1} parent=1 // pred_check
      _
    $region3: #{tpu_custom_call.1} parent=1 // pred_check_branch
      %15 = sbr.rel (0) target = $region5
    $region4: #{tpu_custom_call.1} parent=1 // pred_region
      %s16 = sadd.s32 0, 0
      %s18 = ssub.s32 256, 256
      %19 = vsyncadd [#allocation3], %s18
      %s20 = smul.addr %s16, 128
      %s21 = scalar_lea.hbm %s0, %s20
      %s22 = sshll.u32 [#allocation2], 4
      %s23 = int_to_ptr.vmem [resolvable:$true] %s22
      %28 = dma.hbm_to_vmem [thread:$0]  %s21, 256, %s23, [#allocation3], 128, 128, 8
    $region5: #{tpu_custom_call.1} parent=1 // pred_fallthru
      _
    // Predicated region
    $region6: #{tpu_custom_call.1} parent=1 // pred_check
      _
    $region7: #{tpu_custom_call.1} parent=1 // pred_check_branch
      %30 = sbr.rel (0) target = $region9
    $region8: #{tpu_custom_call.1} parent=1 // pred_region
      %s31 = sadd.s32 0, 0
      %s33 = ssub.s32 256, 256
      %34 = vsyncadd [#allocation6], %s33
      %s35 = smul.addr %s31, 128
      %s36 = scalar_lea.hbm %s1, %s35
      %s37 = sshll.u32 [#allocation5], 4
      %s38 = int_to_ptr.vmem [resolvable:$true] %s37
      %43 = dma.hbm_to_vmem [thread:$0]  %s36, 256, %s38, [#allocation6], 128, 128, 8
    $region9: #{tpu_custom_call.1} parent=1 // pred_fallthru
      _
    // Predicated region
    $region10: #{tpu_custom_call.1} parent=1 // pred_check
      _
    $region11: #{tpu_custom_call.1} parent=1 // pred_check_branch
      %45 = sbr.rel (0) target = $region13
    $region12: #{tpu_custom_call.1} parent=1 // pred_region
      %s46 = sadd.s32 0, 0
      %s48 = ssub.s32 256, 256
      %49 = vsyncadd [#allocation6], %s48
      %s50 = smul.addr %s46, 128
      %s51 = scalar_lea.hbm %s2, %s50
      %s52 = sshll.u32 [#allocation7], 4
      %s53 = int_to_ptr.vmem [resolvable:$true] %s52
      %58 = dma.hbm_to_vmem [thread:$0]  %s51, 256, %s53, [#allocation6], 128, 128, 8
    $region13: #{tpu_custom_call.1} parent=1 // pred_fallthru
      _
    // Predicated region
    $region14: #{tpu_custom_call.1} parent=1 // pred_check
      _
    $region15: #{tpu_custom_call.1} parent=1 // pred_check_branch
      %60 = sbr.rel (0) target = $region17
    $region16: #{tpu_custom_call.1} parent=1 // pred_region
      %61 = dma.done [#allocation3], 256
    $region17: #{tpu_custom_call.1} parent=1 // pred_fallthru
      _
    // Predicated region
    $region18: #{tpu_custom_call.1} parent=1 // pred_check
      _
    $region19: #{tpu_custom_call.1} parent=1 // pred_check_branch
      %63 = sbr.rel (0) target = $region21
    $region20: #{tpu_custom_call.1} parent=1 // pred_region
      %64 = dma.done [#allocation6], 256
    $region21: #{tpu_custom_call.1} parent=1 // pred_fallthru
      _
    // Predicated region
    $region22: #{tpu_custom_call.1} parent=1 // pred_check
      _
    $region23: #{tpu_custom_call.1} parent=1 // pred_check_branch
      %66 = sbr.rel (0) target = $region25
    $region24: #{tpu_custom_call.1} parent=1 // pred_region
      %67 = dma.done [#allocation6], 256
    $region25: #{tpu_custom_call.1} parent=1 // pred_fallthru
      _
    %s68 = sadd.s32 0, 0
    %s69 = sadd.s32 0, 0
    %s70 = sadd.s32 0, 0
    %p71 = scmp.eq.s32.totalorder 0, 0
    // Predicated region
    $region26: #{tpu_custom_call.1} parent=1 // pred_check
      %p72 = pneg %p71
    $region27: #{tpu_custom_call.1} parent=1 // pred_check_branch
      %74 = sbr.rel (%p72) target = $region29
    $region28: #{tpu_custom_call.1} parent=1 // pred_region
      %75 = vst [vmem:[#allocation8] sm:$0xff] 0.0
      %76 = vst [vmem:[#allocation8 + $0x8] sm:$0xff] 0.0
      %77 = vst [vmem:[#allocation9] sm:$0xff] 0.0
      %78 = vst [vmem:[#allocation9 + $0x8] sm:$0xff] 0.0
    $region29: #{tpu_custom_call.1} parent=1 // pred_fallthru
      _
    %v79 = vld [vmem:[#allocation2] sm:$0xff]
    %v80 = vld [vmem:[#allocation2 + $0x8] sm:$0xff]
    %v81 = vld [vmem:[#allocation5] sm:$0xff]
    %v82 = vld [vmem:[#allocation5 + $0x8] sm:$0xff]
    %v83 = vld [vmem:[#allocation7] sm:$0xff]
    %v84 = vld [vmem:[#allocation7 + $0x8] sm:$0xff]
    %v85 = vsub.f32 %v79, %v81
    %v86 = vsub.f32 %v80, %v82
    %v87 = vsub.f32 %v79, %v83
    %v88 = vsub.f32 %v80, %v84
    %v89 = vld [vmem:[#allocation8] sm:$0xff]
    %v90 = vld [vmem:[#allocation8 + $0x8] sm:$0xff]
    %v91 = vmul.f32 %v85, %v85
    %v92 = vmul.f32 %v86, %v86
    %v93 = vadd.f32 %v91, 0.0
    %v94 = vadd.f32 %v92, 0.0
    %v95 = vadd.f32 %v89, %v93
    %v96 = vadd.f32 %v90, %v94
    %97 = vst [vmem:[#allocation8] sm:$0xff] %v95
    %98 = vst [vmem:[#allocation8 + $0x8] sm:$0xff] %v96
    %v99 = vld [vmem:[#allocation9] sm:$0xff]
    %v100 = vld [vmem:[#allocation9 + $0x8] sm:$0xff]
    %v101 = vmul.f32 %v87, %v87
    %v102 = vmul.f32 %v88, %v88
    %v103 = vadd.f32 %v101, 0.0
    %v104 = vadd.f32 %v102, 0.0
    %v105 = vadd.f32 %v99, %v103
    %v106 = vadd.f32 %v100, %v104
    %107 = vst [vmem:[#allocation9] sm:$0xff] %v105
    %108 = vst [vmem:[#allocation9 + $0x8] sm:$0xff] %v106
    // Predicated region
    $region30: #{tpu_custom_call.1} parent=1 // pred_check
      _
    $region31: #{tpu_custom_call.1} parent=1 // pred_check_branch
      %110 = sbr.rel (0) target = $region33
    $region32: #{tpu_custom_call.1} parent=1 // pred_region
      %s112 = ssub.s32 256, 256
      %113 = vsyncadd [#allocation4], %s112
      %s114 = sshll.u32 [#allocation8], 4
      %s115 = int_to_ptr.vmem [resolvable:$true] %s114
      %120 = dma.vmem_to_hbm [thread:$0]  %s115, 256, %s3, [#allocation4], 128, 128, 8
    $region33: #{tpu_custom_call.1} parent=1 // pred_fallthru
      _
    // Predicated region
    $region34: #{tpu_custom_call.1} parent=1 // pred_check
      _
    $region35: #{tpu_custom_call.1} parent=1 // pred_check_branch
      %122 = sbr.rel (0) target = $region37
    $region36: #{tpu_custom_call.1} parent=1 // pred_region
      %s124 = ssub.s32 256, 256
      %125 = vsyncadd [#allocation10], %s124
      %s126 = sshll.u32 [#allocation9], 4
      %s127 = int_to_ptr.vmem [resolvable:$true] %s126
      %132 = dma.vmem_to_hbm [thread:$0]  %s127, 256, %s4, [#allocation10], 128, 128, 8
    $region37: #{tpu_custom_call.1} parent=1 // pred_fallthru
      _
    // Predicated region
    $region38: #{tpu_custom_call.1} parent=1 // pred_check
      _
    $region39: #{tpu_custom_call.1} parent=1 // pred_check_branch
      %134 = sbr.rel (0) target = $region41
    $region40: #{tpu_custom_call.1} parent=1 // pred_region
      %135 = dma.done [#allocation4], 256
    $region41: #{tpu_custom_call.1} parent=1 // pred_fallthru
      _
    // Predicated region
    $region42: #{tpu_custom_call.1} parent=1 // pred_check
      _
    $region43: #{tpu_custom_call.1} parent=1 // pred_check_branch
      %137 = sbr.rel (0) target = $region45
    $region44: #{tpu_custom_call.1} parent=1 // pred_region
      %138 = dma.done [#allocation10], 256
    $region45: #{tpu_custom_call.1} parent=1 // pred_fallthru
      _
    %139 = vsyncpa [#allocation3], 1
    %140 = vsyncpa [#allocation6], 1
    %141 = vsyncpa [#allocation4], 1
    %142 = vsyncpa [#allocation10], 1

</llo_original>
